<compile_context>
chip_gen: v5e
topology: v5e:2x2
jax: 0.10.0
libtpu: 0.0.40
codegen_flags: <defaults>
</compile_context>

<pallas_src>
import functools
import math

import jax
import jax.numpy as jnp
from jax.experimental import pallas as pl
from jax.experimental.pallas import tpu as pltpu


# ------------------------------ Pallas kernel -------------------------------

def _conv3x3_kernel(x_ref, w_ref, b_ref, o_ref, *, tile_h, W, Cin, Cout):
    """One (batch, row-tile) step: 3x3 conv as a single fused MXU contraction.

    x_ref : (1, tile_h+2, W+2, Cin)  bf16   halo'd input slab (channels-last)
    w_ref : (Cout, 9*Cin)            bf16   fused weights, col = (3*dx+dy)*Cin + c
    b_ref : (Cout, 1)                f32    bias
    o_ref : (1, Cout, tile_h*W)      f32    lane-dense output (pixels in lanes)
    """
    xs = x_ref[0]                                      # (tile_h+2, W+2, Cin)

    # In-VMEM im2col: 9 shifted views -> one (tile_h*W, 9*Cin) patch.
    taps = []
    for dx in range(3):                                # 3 sublane-axis shifts
        xw = xs[:, dx:dx + W, :]                       # (tile_h+2, W, Cin)
        for dy in range(3):                            # cheap leading-axis slices
            taps.append(xw[dy:dy + tile_h].reshape(tile_h * W, Cin))
    patch = jnp.concatenate(taps, axis=1)              # (tile_h*W, 9*Cin)

    # One MXU pass (K = 9*Cin), q.k^T-style contraction so the result already
    # has pixels in the lane dimension: (Cout, 9*Cin) x (tile_h*W, 9*Cin)^T.
    acc = jax.lax.dot_general(
        w_ref[...], patch,
        dimension_numbers=(((1,), (1,)), ((), ())),
        preferred_element_type=jnp.float32)            # (Cout, tile_h*W)

    o_ref[0] = (acc + b_ref[...]).astype(o_ref.dtype)  # unmasked lane-dense store


# ------------------------------ tile planning -------------------------------

def _plan_tiles(B, H, W, Cin, Cout, max_step_bytes=6 * 1024 * 1024):
    """Pick output rows per grid step (tile_h) and the number of row tiles."""
    # Smallest tile_h whose output block (tile_h*W lanes) is a multiple of 128.
    t_unit = max(1, 128 // math.gcd(W, 128))

    def step_bytes(th):                                # rough per-step VMEM use
        slab = Cin * (th + 2) * (W + 2) * 2            # bf16 input slab
        patch = 9 * Cin * th * W * 2                   # bf16 im2col patch (+taps)
        out = Cout * th * W * 4                        # f32 output block
        return 2 * slab + 2 * out + 2 * patch          # double-buffered blocks

    # Keep >= 2 parallel grid steps when B == 1 so both v7x TensorCores work.
    want_split = (B == 1 and H > t_unit)
    if not want_split and step_bytes(H) <= max_step_bytes:
        return H, 1                                    # whole image per step

    k = max(1, pl.cdiv(H, t_unit))
    if want_split:
        k = max(1, k // 2)
    while k > 1 and step_bytes(k * t_unit) > max_step_bytes:
        k -= 1
    tile_h = k * t_unit
    return tile_h, pl.cdiv(H, tile_h)


# -------------------------------- wrapper ------------------------------------

def conv3x3_same(x_nchw, weight, bias, *, compute_dtype=jnp.bfloat16):
    """3x3 'same' convolution with bias.  x: NCHW f32, weight: (Cout,Cin,3,3)."""
    B, Cin, H, W = x_nchw.shape
    Cout = weight.shape[0]

    tile_h, n_hb = _plan_tiles(B, H, W, Cin, Cout)
    H_eff = tile_h * n_hb

    # NCHW -> NHWC (channels-last slab keeps the in-kernel im2col reshape a
    # cheap leading-dim collapse), 1-px zero halo (+ extra bottom rows so H
    # tiles evenly), bf16 MXU operands.
    # TODO(synk): accept NHWC inputs / fuse this pad+cast into the kernel's DMA
    # to save one extra HBM pass over x.
    x_nhwc = jnp.transpose(x_nchw, (0, 2, 3, 1)).astype(compute_dtype)
    xp = jnp.pad(x_nhwc, ((0, 0), (1, 1 + H_eff - H), (1, 1), (0, 0)))

    # Non-overlapping halo'd slabs -> a plain Blocked BlockSpec auto
    # double-buffers the input DMA (overlaps it with compute); only the 2 halo
    # rows per tile are duplicated (nothing when the whole image is one tile).
    if n_hb == 1:
        slabs = xp                                         # (B, H+2, W+2, Cin)
    else:
        slabs = jnp.stack([xp[:, i * tile_h: i * tile_h + tile_h + 2]
                           for i in range(n_hb)], axis=1)
        slabs = slabs.reshape(B * n_hb, tile_h + 2, W + 2, Cin)

    # (Cout, Cin, 3, 3) -> (Cout, 9*Cin); column index = (3*dx + dy)*Cin + c.
    w = jnp.transpose(weight, (0, 3, 2, 1)).reshape(Cout, 9 * Cin)
    w = w.astype(compute_dtype)
    b2 = bias.reshape(Cout, 1).astype(jnp.float32)

    kern = functools.partial(_conv3x3_kernel, tile_h=tile_h, W=W,
                             Cin=Cin, Cout=Cout)
    out = pl.pallas_call(
        kern,
        out_shape=jax.ShapeDtypeStruct((B, Cout, H_eff * W), jnp.float32),
        grid=(B, n_hb),
        in_specs=[
            pl.BlockSpec((1, tile_h + 2, W + 2, Cin),
                         lambda b, i: (b * n_hb + i, 0, 0, 0)),
            pl.BlockSpec((Cout, 9 * Cin), lambda b, i: (0, 0)),
            # TODO(synk): bias could live in SMEM; the (Cout,1) VMEM block is a
            # single padded (8,128) tile, negligible here.
            pl.BlockSpec((Cout, 1), lambda b, i: (0, 0)),
        ],
        out_specs=pl.BlockSpec((1, Cout, tile_h * W), lambda b, i: (b, 0, i)),
        compiler_params=pltpu.CompilerParams(
            dimension_semantics=("parallel", "parallel"),
            vmem_limit_bytes=32 * 1024 * 1024),
    )(slabs, w, b2)

    # Output is already channel-major: just un-flatten the pixel axis.
    out = out.reshape(B, Cout, H_eff, W)
    if H_eff != H:
        # TODO(synk): the last tile computes (then drops) the zero-padded
        # bottom rows when H % tile_h != 0.
        out = out[:, :, :H]
    return out


def output_proj_forward(x, params):
    # nn.Sequential(Conv2d(in, out, 3, stride=1, padding=1)); norm/act are None
    # in the default config, so the forward pass is just the convolution.
    # TODO(synk): optional norm_layer / act_layer (None by default) not implemented.
    return conv3x3_same(x, params["weight"], params["bias"])


def init_params(key, in_channel=24, out_channel=3):
    # Mirrors torch Conv2d default init: U(-1/sqrt(fan_in), 1/sqrt(fan_in)).
    kw, kb = jax.random.split(key)
    fan_in = in_channel * 9
    bound = 1.0 / float(fan_in ** 0.5)
    weight = jax.random.uniform(kw, (out_channel, in_channel, 3, 3),
                                jnp.float32, -bound, bound)
    bias = jax.random.uniform(kb, (out_channel,), jnp.float32, -bound, bound)
    return {"weight": weight, "bias": bias}


if __name__ == "__main__":
    key = jax.random.PRNGKey(0)
    kx1, kx2, kp = jax.random.split(key, 3)

    Cin, Cout = 24, 3                     # OutputProj defaults: 24 -> 3
    params = init_params(kp, Cin, Cout)

    def reference(x):
        # Same bf16-operand / f32-accumulation conv through XLA.
        r = jax.lax.conv_general_dilated(
            x.astype(jnp.bfloat16), params["weight"].astype(jnp.bfloat16),
            window_strides=(1, 1), padding="SAME",
            dimension_numbers=("NCHW", "OIHW", "NCHW"),
            preferred_element_type=jnp.float32)
        return r + params["bias"].reshape(1, Cout, 1, 1)

    # Case 1: B=2, 16x16 -> whole-image blocks, grid=(2, 1), 2 parallel steps.
    x1 = jax.random.normal(kx1, (2, Cin, 16, 16), jnp.float32)
    y1 = jax.block_until_ready(output_proj_forward(x1, params))
    assert y1.shape == (2, Cout, 16, 16), y1.shape
    assert bool(jnp.all(jnp.isfinite(y1)))
    assert bool(jnp.allclose(y1, reference(x1), atol=2e-2, rtol=2e-2)), \
        float(jnp.max(jnp.abs(y1 - reference(x1))))

    # Case 2: B=1, 32x16 -> two row tiles, grid=(1, 2) (two parallel steps).
    x2 = jax.random.normal(kx2, (1, Cin, 32, 16), jnp.float32)
    y2 = jax.block_until_ready(output_proj_forward(x2, params))
    assert y2.shape == (1, Cout, 32, 16), y2.shape
    assert bool(jnp.allclose(y2, reference(x2), atol=2e-2, rtol=2e-2)), \
        float(jnp.max(jnp.abs(y2 - reference(x2))))

    print("KERNEL_OK")
</pallas_src>

<mosaic_0001>
module attributes {stable_mosaic.version = 11 : i64} {
  func.func @_conv3x3_kernel(%arg0: i32, %arg1: i32, %arg2: memref<1x18x18x24xbf16, #tpu.memory_space<vmem>>, %arg3: memref<3x216xbf16, #tpu.memory_space<vmem>>, %arg4: memref<3x1xf32, #tpu.memory_space<vmem>>, %arg5: memref<1x3x256xf32, #tpu.memory_space<vmem>>) attributes {dimension_semantics = [#tpu.dimension_semantics<parallel>, #tpu.dimension_semantics<parallel>], iteration_bounds = array<i64: 2, 1>, scalar_prefetch = 0 : i64, scratch_operands = 0 : i64, tpu.core_type = #tpu.core_type<tc>, window_params = [{transform_indices = @transform_0, window_bounds = array<i64: 1, 18, 18, 24>}, {pipeline_mode = #tpu.pipeline_mode<synchronous>, transform_indices = @transform_1, window_bounds = array<i64: 3, 216>}, {pipeline_mode = #tpu.pipeline_mode<synchronous>, transform_indices = @transform_2, window_bounds = array<i64: 3, 1>}, {transform_indices = @transform_3, window_bounds = array<i64: 1, 3, 256>}]} {
    %c0 = arith.constant 0 : index
    %c0_0 = arith.constant 0 : index
    %c0_1 = arith.constant 0 : index
    %c0_2 = arith.constant 0 : index
    %0 = vector.load %arg2[%c0, %c0_0, %c0_1, %c0_2] : memref<1x18x18x24xbf16, #tpu.memory_space<vmem>>, vector<1x18x18x24xbf16>
    %1 = vector.shape_cast %0 : vector<1x18x18x24xbf16> to vector<18x18x24xbf16>
    %2 = vector.extract_strided_slice %1 {offsets = [0, 0, 0], sizes = [18, 16, 24], strides = [1, 1, 1]} : vector<18x18x24xbf16> to vector<18x16x24xbf16>
    %3 = vector.extract_strided_slice %2 {offsets = [0, 0, 0], sizes = [16, 16, 24], strides = [1, 1, 1]} : vector<18x16x24xbf16> to vector<16x16x24xbf16>
    %4 = vector.shape_cast %3 : vector<16x16x24xbf16> to vector<256x24xbf16>
    %5 = vector.extract_strided_slice %2 {offsets = [1, 0, 0], sizes = [16, 16, 24], strides = [1, 1, 1]} : vector<18x16x24xbf16> to vector<16x16x24xbf16>
    %6 = vector.shape_cast %5 : vector<16x16x24xbf16> to vector<256x24xbf16>
    %7 = vector.extract_strided_slice %2 {offsets = [2, 0, 0], sizes = [16, 16, 24], strides = [1, 1, 1]} : vector<18x16x24xbf16> to vector<16x16x24xbf16>
    %8 = vector.shape_cast %7 : vector<16x16x24xbf16> to vector<256x24xbf16>
    %9 = vector.extract_strided_slice %1 {offsets = [0, 1, 0], sizes = [18, 16, 24], strides = [1, 1, 1]} : vector<18x18x24xbf16> to vector<18x16x24xbf16>
    %10 = vector.extract_strided_slice %9 {offsets = [0, 0, 0], sizes = [16, 16, 24], strides = [1, 1, 1]} : vector<18x16x24xbf16> to vector<16x16x24xbf16>
    %11 = vector.shape_cast %10 : vector<16x16x24xbf16> to vector<256x24xbf16>
    %12 = vector.extract_strided_slice %9 {offsets = [1, 0, 0], sizes = [16, 16, 24], strides = [1, 1, 1]} : vector<18x16x24xbf16> to vector<16x16x24xbf16>
    %13 = vector.shape_cast %12 : vector<16x16x24xbf16> to vector<256x24xbf16>
    %14 = vector.extract_strided_slice %9 {offsets = [2, 0, 0], sizes = [16, 16, 24], strides = [1, 1, 1]} : vector<18x16x24xbf16> to vector<16x16x24xbf16>
    %15 = vector.shape_cast %14 : vector<16x16x24xbf16> to vector<256x24xbf16>
    %16 = vector.extract_strided_slice %1 {offsets = [0, 2, 0], sizes = [18, 16, 24], strides = [1, 1, 1]} : vector<18x18x24xbf16> to vector<18x16x24xbf16>
    %17 = vector.extract_strided_slice %16 {offsets = [0, 0, 0], sizes = [16, 16, 24], strides = [1, 1, 1]} : vector<18x16x24xbf16> to vector<16x16x24xbf16>
    %18 = vector.shape_cast %17 : vector<16x16x24xbf16> to vector<256x24xbf16>
    %19 = vector.extract_strided_slice %16 {offsets = [1, 0, 0], sizes = [16, 16, 24], strides = [1, 1, 1]} : vector<18x16x24xbf16> to vector<16x16x24xbf16>
    %20 = vector.shape_cast %19 : vector<16x16x24xbf16> to vector<256x24xbf16>
    %21 = vector.extract_strided_slice %16 {offsets = [2, 0, 0], sizes = [16, 16, 24], strides = [1, 1, 1]} : vector<18x16x24xbf16> to vector<16x16x24xbf16>
    %22 = vector.shape_cast %21 : vector<16x16x24xbf16> to vector<256x24xbf16>
    %23 = tpu.concatenate %4, %6, %8, %11, %13, %15, %18, %20, %22 in 1 : vector<256x24xbf16>, vector<256x24xbf16>, vector<256x24xbf16>, vector<256x24xbf16>, vector<256x24xbf16>, vector<256x24xbf16>, vector<256x24xbf16>, vector<256x24xbf16>, vector<256x24xbf16> -> vector<256x216xbf16>
    %c0_3 = arith.constant 0 : index
    %c0_4 = arith.constant 0 : index
    %24 = vector.load %arg3[%c0_3, %c0_4] : memref<3x216xbf16, #tpu.memory_space<vmem>>, vector<3x216xbf16>
    %cst = arith.constant dense<0.000000e+00> : vector<3x256xf32>
    %25 = tpu.matmul %24, %23, %cst {dimension_numbers = #tpu.dot_dimension_numbers<[1], [1], [0], [0], [0, 0, 1, 0], [], []>} : vector<3x216xbf16>, vector<256x216xbf16>, vector<3x256xf32> -> vector<3x256xf32>
    %c0_5 = arith.constant 0 : index
    %c0_6 = arith.constant 0 : index
    %26 = vector.load %arg4[%c0_5, %c0_6] : memref<3x1xf32, #tpu.memory_space<vmem>>, vector<3x1xf32>
    %27 = vector.broadcast %26 : vector<3x1xf32> to vector<3x256xf32>
    %28 = arith.addf %25, %27 : vector<3x256xf32>
    %c0_7 = arith.constant 0 : index
    %c0_8 = arith.constant 0 : index
    %c0_9 = arith.constant 0 : index
    %29 = vector.load %arg5[%c0_7, %c0_8, %c0_9] : memref<1x3x256xf32, #tpu.memory_space<vmem>>, vector<1x3x256xf32>
    %30 = vector.shape_cast %29 : vector<1x3x256xf32> to vector<3x256xf32>
    %31 = vector.shape_cast %28 : vector<3x256xf32> to vector<1x3x256xf32>
    tpu.vector_store %arg5[%c0_7, %c0_8, %c0_9], %31 {strides = array<i32>} : memref<1x3x256xf32, #tpu.memory_space<vmem>>, vector<1x3x256xf32>,
    return
  }
  func.func @transform_0(%arg0: i32, %arg1: i32) -> (i32, i32, i32, i32) {
    %c1_i32 = arith.constant 1 : i32
    %0 = arith.muli %arg0, %c1_i32 : i32
    %1 = arith.addi %0, %arg1 : i32
    %c0_i32 = arith.constant 0 : i32
    %c0_i32_0 = arith.constant 0 : i32
    %c0_i32_1 = arith.constant 0 : i32
    %c0_i32_2 = arith.constant 0 : i32
    return %1, %c0_i32, %c0_i32_0, %c0_i32_1 : i32, i32, i32, i32
  }
  func.func @transform_1(%arg0: i32, %arg1: i32) -> (i32, i32) {
    %c0_i32 = arith.constant 0 : i32
    %c0_i32_0 = arith.constant 0 : i32
    %c0_i32_1 = arith.constant 0 : i32
    return %c0_i32, %c0_i32_0 : i32, i32
  }
  func.func @transform_2(%arg0: i32, %arg1: i32) -> (i32, i32) {
    %c0_i32 = arith.constant 0 : i32
    %c0_i32_0 = arith.constant 0 : i32
    %c0_i32_1 = arith.constant 0 : i32
    return %c0_i32, %c0_i32_0 : i32, i32
  }
  func.func @transform_3(%arg0: i32, %arg1: i32) -> (i32, i32, i32) {
    %c0_i32 = arith.constant 0 : i32
    %c0_i32_0 = arith.constant 0 : i32
    return %arg0, %c0_i32, %arg1 : i32, i32, i32
  }
}

</mosaic_0001>

<llo_original>
// kernel: tpu_custom_call.1
$region0: #{tpu_custom_call.1}
  #allocation0 [shape = 'u32[]', space=smem, size = 0x4, offset = 0x4, fixed_abs, tag = 'smem constant byte address 0x4 - core index']
  #allocation1 [shape = 'u32[72,128]{1,0:T(1,128)}', space=vmem, size = 0x9000, scoped, tag = 'internal scratch']
  %s0 = inlined_call_operand.vmem [shape: bf16[2,18,18,24], index: 0, kind: input, shape index: {}]
  %s1 = inlined_call_operand.vmem [shape: bf16[3,216], index: 1, kind: input, shape index: {}]
  %s2 = inlined_call_operand.vmem [shape: f32[3,1], index: 2, kind: input, shape index: {}]
  %s3 = inlined_call_operand.vmem [shape: f32[2,3,256], index: 3, kind: output, shape index: {}]
  %s4 = sld [smem:[#allocation0]]
  $region45: #{tpu_custom_call.1} parent=0
    _
  %s6 = ssub.s32 1, %s4
  %s7 = scalar_select 0, %s6, %s4
  loop: start=0, step=1, limit=4
  $region2: #{tpu_custom_call.1} parent=0 // loop_pre_header
    _
  $region3: #{tpu_custom_call.1} parent=0 // loop_header
    %s9 = sphi 0, %s13
    %p10 = scmp.ge.s32.totalorder %s9, 4
    %s16 = sphi 0, %s28
    %s17 = sphi 0, %s24
    %s18 = sphi 0, %s16
    %s19 = sphi 0, %s17
    %s20 = sphi 0, %s18
    %s21 = sphi 0, %s19
    %s33 = sphi 0, %s35
    %s36 = sphi 0, %s33
    %s37 = sphi 0, %s36
    %s53 = sphi 0, %s37
    %s57 = sphi 0, %s57
    %s59 = sphi 0, %s57
    %s60 = sphi 0, %s59
    %s74 = sphi 0, %s60
    %s78 = sphi 0, %s78
    %s80 = sphi 0, %s78
    %s81 = sphi 0, %s80
    %s95 = sphi 0, %s81
    %s103 = sphi 0, %s105
    %s106 = sphi 0, %s103
    %s107 = sphi 0, %s106
    %s123 = sphi 0, %s107
  $region4: #{tpu_custom_call.1} parent=0 // loop_header_branch
    %12 = sbr.rel (%p10) target = $region8
  $region5: #{tpu_custom_call.1} parent=0 // loop_body
    %s14 = ssub.s32 %s9, 1
    %s15 = ssub.s32 %s9, 2
    %s22 = sadd.s32 1, %s17
    %p23 = scmp.ge.s32.totalorder %s22, 1
    %s24 = scalar_select %p23, 0, %s22
    %s25 = sadd.s32 1, %s16
    %s26 = scalar_select %p23, %s25, %s16
    %p27 = scmp.ge.s32.totalorder %s26, 2
    %s28 = scalar_select %p27, 0, %s26
    %s29 = sadd.s32 %s16, %s17
    %s30 = sadd.s32 %s28, %s24
    %s31 = ssub.s32 %s29, %s30
    %p32 = scmp.eq.s32.totalorder %s31, 0
    %s34 = sadd.s32 %s33, 1
    %s35 = scalar_select %p32, %s33, %s34
    %p38 = pneg %p32
    %p39 = scmp.eq.s32.totalorder %s9, 1
    %p40 = por %p38, %p39
    %p41 = scmp.ne.s32.totalorder %s33, %s36
    %p42 = scmp.eq.s32.totalorder %s9, 0
    %p43 = por %p41, %p42
    %p44 = scmp.ne.s32.totalorder %s33, %s36
    %p45 = scmp.eq.s32.totalorder %s14, 1
    %p46 = por %p44, %p45
    %p47 = scmp.ne.s32.totalorder %s36, %s37
    %p48 = scmp.eq.s32.totalorder %s14, 0
    %p49 = por %p47, %p48
    %p50 = scmp.ne.s32.totalorder %s36, %s37
    %p51 = scmp.eq.s32.totalorder %s15, 1
    %p52 = por %p50, %p51
    %p54 = scmp.ne.s32.totalorder %s37, %s53
    %p55 = scmp.eq.s32.totalorder %s15, 0
    %p56 = por %p54, %p55
    %s58 = sadd.s32 %s57, 1
    %p61 = scmp.eq.s32.totalorder %s9, 1
    %p62 = scmp.ne.s32.totalorder %s57, %s59
    %p63 = scmp.eq.s32.totalorder %s9, 0
    %p64 = por %p62, %p63
    %p65 = scmp.ne.s32.totalorder %s57, %s59
    %p66 = scmp.eq.s32.totalorder %s14, 1
    %p67 = por %p65, %p66
    %p68 = scmp.ne.s32.totalorder %s59, %s60
    %p69 = scmp.eq.s32.totalorder %s14, 0
    %p70 = por %p68, %p69
    %p71 = scmp.ne.s32.totalorder %s59, %s60
    %p72 = scmp.eq.s32.totalorder %s15, 1
    %p73 = por %p71, %p72
    %p75 = scmp.ne.s32.totalorder %s60, %s74
    %p76 = scmp.eq.s32.totalorder %s15, 0
    %p77 = por %p75, %p76
    %s79 = sadd.s32 %s78, 1
    %p82 = scmp.eq.s32.totalorder %s9, 1
    %p83 = scmp.ne.s32.totalorder %s78, %s80
    %p84 = scmp.eq.s32.totalorder %s9, 0
    %p85 = por %p83, %p84
    %p86 = scmp.ne.s32.totalorder %s78, %s80
    %p87 = scmp.eq.s32.totalorder %s14, 1
    %p88 = por %p86, %p87
    %p89 = scmp.ne.s32.totalorder %s80, %s81
    %p90 = scmp.eq.s32.totalorder %s14, 0
    %p91 = por %p89, %p90
    %p92 = scmp.ne.s32.totalorder %s80, %s81
    %p93 = scmp.eq.s32.totalorder %s15, 1
    %p94 = por %p92, %p93
    %p96 = scmp.ne.s32.totalorder %s81, %s95
    %p97 = scmp.eq.s32.totalorder %s15, 0
    %p98 = por %p96, %p97
    %s99 = ssub.s32 %s16, %s28
    %s100 = ssub.s32 %s17, %s24
    %s101 = sor.u32 %s99, %s100
    %p102 = scmp.eq.s32.totalorder %s101, 0
    %s104 = sadd.s32 %s103, 1
    %s105 = scalar_select %p102, %s103, %s104
    %p108 = pneg %p102
    %p109 = scmp.eq.s32.totalorder %s9, 1
    %p110 = por %p108, %p109
    %p111 = scmp.ne.s32.totalorder %s103, %s106
    %p112 = scmp.eq.s32.totalorder %s9, 0
    %p113 = por %p111, %p112
    %p114 = scmp.ne.s32.totalorder %s103, %s106
    %p115 = scmp.eq.s32.totalorder %s14, 1
    %p116 = por %p114, %p115
    %p117 = scmp.ne.s32.totalorder %s106, %s107
    %p118 = scmp.eq.s32.totalorder %s14, 0
    %p119 = por %p117, %p118
    %p120 = scmp.ne.s32.totalorder %s106, %s107
    %p121 = scmp.eq.s32.totalorder %s15, 1
    %p122 = por %p120, %p121
    %p124 = scmp.ne.s32.totalorder %s107, %s123
    %p125 = scmp.eq.s32.totalorder %s15, 0
    %p126 = por %p124, %p125
    %p127 = scmp.le.s32.totalorder 1, %s9
    %p128 = scmp.lt.s32.totalorder %s9, 3
    %p129 = pnand %p127, %p128
    %p130 = pneg %p129
    // Predicated region
    $region9: #{tpu_custom_call.1} parent=5 // pred_check
      _
    $region10: #{tpu_custom_call.1} parent=5 // pred_check_branch
      %132 = sbr.rel (%p129) target = $region12
    $region11: #{tpu_custom_call.1} parent=5 // pred_region
      %s133 = ssub.s32 %s9, 1
      // Predicated region
      $region13: #{tpu_custom_call.1} parent=11 // pred_check
        %p134 = pneg %p70
      $region14: #{tpu_custom_call.1} parent=11 // pred_check_branch
        %136 = sbr.rel (%p134) target = $region16
      $region15: #{tpu_custom_call.1} parent=11 // pred_region
        _
      $region16: #{tpu_custom_call.1} parent=11 // pred_fallthru
        _
      // Predicated region
      $region17: #{tpu_custom_call.1} parent=11 // pred_check
        %p137 = pneg %p91
      $region18: #{tpu_custom_call.1} parent=11 // pred_check_branch
        %139 = sbr.rel (%p137) target = $region20
      $region19: #{tpu_custom_call.1} parent=11 // pred_region
        _
      $region20: #{tpu_custom_call.1} parent=11 // pred_fallthru
        _
    $region12: #{tpu_custom_call.1} parent=5 // pred_fallthru
      _
    %p140 = scmp.lt.s32.totalorder %s9, 2
    // Predicated region
    $region21: #{tpu_custom_call.1} parent=5 // pred_check
      %p141 = pneg %p140
    $region22: #{tpu_custom_call.1} parent=5 // pred_check_branch
      %143 = sbr.rel (%p141) target = $region24
    $region23: #{tpu_custom_call.1} parent=5 // pred_region
      // Predicated region
      $region25: #{tpu_custom_call.1} parent=23 // pred_check
        %p144 = pneg %p43
      $region26: #{tpu_custom_call.1} parent=23 // pred_check_branch
        %146 = sbr.rel (%p144) target = $region28
      $region27: #{tpu_custom_call.1} parent=23 // pred_region
        %s147 = sadd.s32 %s16, %s17
        %p148 = scmp.lt.s32.totalorder %s147, 1
        %s149 = scalar_select %p148, %s147, 1
        %s150 = smul.addr %s149, 54
        %s151 = smul.addr %s150, 4
        %s152 = scalar_lea.vmem %s0, %s151
        %s153 = sadd.s32 %s16, %s17
      $region28: #{tpu_custom_call.1} parent=23 // pred_fallthru
        _
    $region24: #{tpu_custom_call.1} parent=5 // pred_fallthru
      _
    %p154 = scmp.le.s32.totalorder 1, %s9
    %p155 = scmp.lt.s32.totalorder %s9, 3
    %p156 = pnand %p154, %p155
    %p157 = pneg %p156
    // Predicated region
    $region29: #{tpu_custom_call.1} parent=5 // pred_check
      _
    $region30: #{tpu_custom_call.1} parent=5 // pred_check_branch
      %159 = sbr.rel (%p156) target = $region32
    $region31: #{tpu_custom_call.1} parent=5 // pred_region
      %s160 = ssub.s32 %s9, 1
      %s161 = sadd.s32 %s18, %s19
      %p162 = scmp.lt.s32.totalorder %s161, 1
      %s163 = scalar_select %p162, %s161, 1
      %s164 = smul.addr %s163, 54
      %s165 = smul.addr %s164, 4
      %s166 = scalar_lea.vmem %s0, %s165
      %p167 = pneg %p49
      %p168 = pneg %p46
      %p169 = pneg %p70
      %p170 = pneg %p67
      %p171 = pneg %p91
      %p172 = pneg %p88
      %p173 = pneg %p119
      %p174 = pneg %p116
      %s175 = smul.u32 2, %s19
      %p176 = scmp.lt.s32.totalorder %s18, 1
      %s177 = scalar_select %p176, %s18, 1
      %p178 = scmp.lt.s32.totalorder %s175, 1
      %s179 = scalar_select %p178, %s175, 1
      %s180 = smul.addr %s177, 2
      %s181 = sadd.s32 %s179, %s180
      %s182 = smul.addr %s181, 4
      %s183 = scalar_lea.vmem %s3, %s182
      %s184 = sadd.s32 %s18, %s19
      %p185 = scmp.lt.s32.totalorder %s184, 1
      %s186 = scalar_select %p185, %s184, 1
      %s187 = smul.addr %s186, 54
      %s188 = smul.addr %s187, 4
      %s189 = scalar_lea.vmem %s0, %s188
      %s190 = sadd.s32 %s18, %s19
      %s191 = smul.u32 2, %s19
      %p192 = scmp.lt.s32.totalorder %s18, 1
      %s193 = scalar_select %p192, %s18, 1
      %p194 = scmp.lt.s32.totalorder %s191, 1
      %s195 = scalar_select %p194, %s191, 1
      %s196 = smul.addr %s193, 2
      %s197 = sadd.s32 %s195, %s196
      %s198 = smul.addr %s197, 4
      %s199 = scalar_lea.vmem %s3, %s198
      %s200 = smul.u32 2, %s19
      %v201 = vld [vmem:[%s189] sm:$0xf]
      %v202 = vld [vmem:[%s189 + $0x4] sm:$0xf]
      %v203 = vld [vmem:[%s189 + $0x8] sm:$0x1]
      %v204 = vld [vmem:[%s189 + $0xc] sm:$0xf]
      %v205 = vld [vmem:[%s189 + $0x10] sm:$0xf]
      %v206 = vld [vmem:[%s189 + $0x14] sm:$0x1]
      %v207 = vld [vmem:[%s189 + $0x18] sm:$0xf]
      %v208 = vld [vmem:[%s189 + $0x1c] sm:$0xf]
      %v209 = vld [vmem:[%s189 + $0x20] sm:$0x1]
      %v210 = vld [vmem:[%s189 + $0x24] sm:$0xf]
      %v211 = vld [vmem:[%s189 + $0x28] sm:$0xf]
      %v212 = vld [vmem:[%s189 + $0x2c] sm:$0x1]
      %v213 = vld [vmem:[%s189 + $0x30] sm:$0xf]
      %v214 = vld [vmem:[%s189 + $0x34] sm:$0xf]
      %v215 = vld [vmem:[%s189 + $0x38] sm:$0x1]
      %v216 = vld [vmem:[%s189 + $0x3c] sm:$0xf]
      %v217 = vld [vmem:[%s189 + $0x40] sm:$0xf]
      %v218 = vld [vmem:[%s189 + $0x44] sm:$0x1]
      %v219 = vld [vmem:[%s189 + $0x48] sm:$0xf]
      %v220 = vld [vmem:[%s189 + $0x4c] sm:$0xf]
      %v221 = vld [vmem:[%s189 + $0x50] sm:$0x1]
      %v222 = vld [vmem:[%s189 + $0x54] sm:$0xf]
      %v223 = vld [vmem:[%s189 + $0x58] sm:$0xf]
      %v224 = vld [vmem:[%s189 + $0x5c] sm:$0x1]
      %v225 = vld [vmem:[%s189 + $0x60] sm:$0xf]
      %v226 = vld [vmem:[%s189 + $0x64] sm:$0xf]
      %v227 = vld [vmem:[%s189 + $0x68] sm:$0x1]
      %v228 = vld [vmem:[%s189 + $0x6c] sm:$0xf]
      %v229 = vld [vmem:[%s189 + $0x70] sm:$0xf]
      %v230 = vld [vmem:[%s189 + $0x74] sm:$0x1]
      %v231 = vld [vmem:[%s189 + $0x78] sm:$0xf]
      %v232 = vld [vmem:[%s189 + $0x7c] sm:$0xf]
      %v233 = vld [vmem:[%s189 + $0x80] sm:$0x1]
      %v234 = vld [vmem:[%s189 + $0x84] sm:$0xf]
      %v235 = vld [vmem:[%s189 + $0x88] sm:$0xf]
      %v236 = vld [vmem:[%s189 + $0x8c] sm:$0x1]
      %v237 = vld [vmem:[%s189 + $0x90] sm:$0xf]
      %v238 = vld [vmem:[%s189 + $0x94] sm:$0xf]
      %v239 = vld [vmem:[%s189 + $0x98] sm:$0x1]
      %v240 = vld [vmem:[%s189 + $0x9c] sm:$0xf]
      %v241 = vld [vmem:[%s189 + $0xa0] sm:$0xf]
      %v242 = vld [vmem:[%s189 + $0xa4] sm:$0x1]
      %v243 = vld [vmem:[%s189 + $0xa8] sm:$0xf]
      %v244 = vld [vmem:[%s189 + $0xac] sm:$0xf]
      %v245 = vld [vmem:[%s189 + $0xb0] sm:$0x1]
      %v246 = vld [vmem:[%s189 + $0xb4] sm:$0xf]
      %v247 = vld [vmem:[%s189 + $0xb8] sm:$0xf]
      %v248 = vld [vmem:[%s189 + $0xbc] sm:$0x1]
      %v249 = vld [vmem:[%s189 + $0xc0] sm:$0xf]
      %v250 = vld [vmem:[%s189 + $0xc4] sm:$0xf]
      %v251 = vld [vmem:[%s189 + $0xc8] sm:$0x1]
      %v252 = vld [vmem:[%s189 + $0xcc] sm:$0xf]
      %v253 = vld [vmem:[%s189 + $0xd0] sm:$0xf]
      %v254 = vld [vmem:[%s189 + $0xd4] sm:$0x1]
      %vm255 = vsmask.f32 3328
      %vm256 = vsmask.f32 7440
      %vm257 = vmor %vm255, %vm256
      %v259 = vshrl.u32 %v201, 16
      %v261 = vrot.slane %v259, 4
      %v262 = vshll.u32 %v201, 16
      %v264 = vrot.slane %v262, 5
      %v265 = vor.u32 %v261, %v264
      %v266 = vrot.slane %v265, 4
      %v268 = vshll.u32 %v202, 16
      %v270 = vrot.slane %v268, 5
      %v271 = vsel %vm257, %v266, %v270
      %v272 = vshrl.u32 %v202, 16
      %v274 = vrot.slane %v272, 4
      %v275 = vor.u32 %v274, %v270
      %v276 = vrot.slane %v275, 4
      %v278 = vshll.u32 %v203, 16
      %v280 = vrot.slane %v278, 5
      %v281 = vsel %vm257, %v276, %v280
      %v283 = vshrl.u32 %v204, 16
      %v285 = vrot.slane %v283, 4
      %v286 = vshll.u32 %v204, 16
      %v288 = vrot.slane %v286, 5
      %v289 = vor.u32 %v285, %v288
      %v290 = vrot.slane %v289, 4
      %v292 = vshll.u32 %v205, 16
      %v294 = vrot.slane %v292, 5
      %v295 = vsel %vm257, %v290, %v294
      %v296 = vshrl.u32 %v205, 16
      %v298 = vrot.slane %v296, 4
      %v299 = vor.u32 %v298, %v294
      %v300 = vrot.slane %v299, 4
      %v302 = vshll.u32 %v206, 16
      %v304 = vrot.slane %v302, 5
      %v305 = vsel %vm257, %v300, %v304
      %v307 = vshrl.u32 %v207, 16
      %v309 = vrot.slane %v307, 4
      %v310 = vshll.u32 %v207, 16
      %v312 = vrot.slane %v310, 5
      %v313 = vor.u32 %v309, %v312
      %v314 = vrot.slane %v313, 4
      %v316 = vshll.u32 %v208, 16
      %v318 = vrot.slane %v316, 5
      %v319 = vsel %vm257, %v314, %v318
      %v320 = vshrl.u32 %v208, 16
      %v322 = vrot.slane %v320, 4
      %v323 = vor.u32 %v322, %v318
      %v324 = vrot.slane %v323, 4
      %v326 = vshll.u32 %v209, 16
      %v328 = vrot.slane %v326, 5
      %v329 = vsel %vm257, %v324, %v328
      %v331 = vshrl.u32 %v210, 16
      %v333 = vrot.slane %v331, 4
      %v334 = vshll.u32 %v210, 16
      %v336 = vrot.slane %v334, 5
      %v337 = vor.u32 %v333, %v336
      %v338 = vrot.slane %v337, 4
      %v340 = vshll.u32 %v211, 16
      %v342 = vrot.slane %v340, 5
      %v343 = vsel %vm257, %v338, %v342
      %v344 = vshrl.u32 %v211, 16
      %v346 = vrot.slane %v344, 4
      %v347 = vor.u32 %v346, %v342
      %v348 = vrot.slane %v347, 4
      %v350 = vshll.u32 %v212, 16
      %v352 = vrot.slane %v350, 5
      %v353 = vsel %vm257, %v348, %v352
      %v355 = vshrl.u32 %v213, 16
      %v357 = vrot.slane %v355, 4
      %v358 = vshll.u32 %v213, 16
      %v360 = vrot.slane %v358, 5
      %v361 = vor.u32 %v357, %v360
      %v362 = vrot.slane %v361, 4
      %v364 = vshll.u32 %v214, 16
      %v366 = vrot.slane %v364, 5
      %v367 = vsel %vm257, %v362, %v366
      %v368 = vshrl.u32 %v214, 16
      %v370 = vrot.slane %v368, 4
      %v371 = vor.u32 %v370, %v366
      %v372 = vrot.slane %v371, 4
      %v374 = vshll.u32 %v215, 16
      %v376 = vrot.slane %v374, 5
      %v377 = vsel %vm257, %v372, %v376
      %v379 = vshrl.u32 %v216, 16
      %v381 = vrot.slane %v379, 4
      %v382 = vshll.u32 %v216, 16
      %v384 = vrot.slane %v382, 5
      %v385 = vor.u32 %v381, %v384
      %v386 = vrot.slane %v385, 4
      %v388 = vshll.u32 %v217, 16
      %v390 = vrot.slane %v388, 5
      %v391 = vsel %vm257, %v386, %v390
      %v392 = vshrl.u32 %v217, 16
      %v394 = vrot.slane %v392, 4
      %v395 = vor.u32 %v394, %v390
      %v396 = vrot.slane %v395, 4
      %v398 = vshll.u32 %v218, 16
      %v400 = vrot.slane %v398, 5
      %v401 = vsel %vm257, %v396, %v400
      %v403 = vshrl.u32 %v219, 16
      %v405 = vrot.slane %v403, 4
      %v406 = vshll.u32 %v219, 16
      %v408 = vrot.slane %v406, 5
      %v409 = vor.u32 %v405, %v408
      %v410 = vrot.slane %v409, 4
      %v412 = vshll.u32 %v220, 16
      %v414 = vrot.slane %v412, 5
      %v415 = vsel %vm257, %v410, %v414
      %v416 = vshrl.u32 %v220, 16
      %v418 = vrot.slane %v416, 4
      %v419 = vor.u32 %v418, %v414
      %v420 = vrot.slane %v419, 4
      %v422 = vshll.u32 %v221, 16
      %v424 = vrot.slane %v422, 5
      %v425 = vsel %vm257, %v420, %v424
      %v427 = vshrl.u32 %v222, 16
      %v429 = vrot.slane %v427, 4
      %v430 = vshll.u32 %v222, 16
      %v432 = vrot.slane %v430, 5
      %v433 = vor.u32 %v429, %v432
      %v434 = vrot.slane %v433, 4
      %v436 = vshll.u32 %v223, 16
      %v438 = vrot.slane %v436, 5
      %v439 = vsel %vm257, %v434, %v438
      %v440 = vshrl.u32 %v223, 16
      %v442 = vrot.slane %v440, 4
      %v443 = vor.u32 %v442, %v438
      %v444 = vrot.slane %v443, 4
      %v446 = vshll.u32 %v224, 16
      %v448 = vrot.slane %v446, 5
      %v449 = vsel %vm257, %v444, %v448
      %v451 = vshrl.u32 %v225, 16
      %v453 = vrot.slane %v451, 4
      %v454 = vshll.u32 %v225, 16
      %v456 = vrot.slane %v454, 5
      %v457 = vor.u32 %v453, %v456
      %v458 = vrot.slane %v457, 4
      %v460 = vshll.u32 %v226, 16
      %v462 = vrot.slane %v460, 5
      %v463 = vsel %vm257, %v458, %v462
      %v464 = vshrl.u32 %v226, 16
      %v466 = vrot.slane %v464, 4
      %v467 = vor.u32 %v466, %v462
      %v468 = vrot.slane %v467, 4
      %v470 = vshll.u32 %v227, 16
      %v472 = vrot.slane %v470, 5
      %v473 = vsel %vm257, %v468, %v472
      %v475 = vshrl.u32 %v228, 16
      %v477 = vrot.slane %v475, 4
      %v478 = vshll.u32 %v228, 16
      %v480 = vrot.slane %v478, 5
      %v481 = vor.u32 %v477, %v480
      %v482 = vrot.slane %v481, 4
      %v484 = vshll.u32 %v229, 16
      %v486 = vrot.slane %v484, 5
      %v487 = vsel %vm257, %v482, %v486
      %v488 = vshrl.u32 %v229, 16
      %v490 = vrot.slane %v488, 4
      %v491 = vor.u32 %v490, %v486
      %v492 = vrot.slane %v491, 4
      %v494 = vshll.u32 %v230, 16
      %v496 = vrot.slane %v494, 5
      %v497 = vsel %vm257, %v492, %v496
      %v499 = vshrl.u32 %v231, 16
      %v501 = vrot.slane %v499, 4
      %v502 = vshll.u32 %v231, 16
      %v504 = vrot.slane %v502, 5
      %v505 = vor.u32 %v501, %v504
      %v506 = vrot.slane %v505, 4
      %v508 = vshll.u32 %v232, 16
      %v510 = vrot.slane %v508, 5
      %v511 = vsel %vm257, %v506, %v510
      %v512 = vshrl.u32 %v232, 16
      %v514 = vrot.slane %v512, 4
      %v515 = vor.u32 %v514, %v510
      %v516 = vrot.slane %v515, 4
      %v518 = vshll.u32 %v233, 16
      %v520 = vrot.slane %v518, 5
      %v521 = vsel %vm257, %v516, %v520
      %v523 = vshrl.u32 %v234, 16
      %v525 = vrot.slane %v523, 4
      %v526 = vshll.u32 %v234, 16
      %v528 = vrot.slane %v526, 5
      %v529 = vor.u32 %v525, %v528
      %v530 = vrot.slane %v529, 4
      %v532 = vshll.u32 %v235, 16
      %v534 = vrot.slane %v532, 5
      %v535 = vsel %vm257, %v530, %v534
      %v536 = vshrl.u32 %v235, 16
      %v538 = vrot.slane %v536, 4
      %v539 = vor.u32 %v538, %v534
      %v540 = vrot.slane %v539, 4
      %v542 = vshll.u32 %v236, 16
      %v544 = vrot.slane %v542, 5
      %v545 = vsel %vm257, %v540, %v544
      %v547 = vshrl.u32 %v237, 16
      %v549 = vrot.slane %v547, 4
      %v550 = vshll.u32 %v237, 16
      %v552 = vrot.slane %v550, 5
      %v553 = vor.u32 %v549, %v552
      %v554 = vrot.slane %v553, 4
      %v556 = vshll.u32 %v238, 16
      %v558 = vrot.slane %v556, 5
      %v559 = vsel %vm257, %v554, %v558
      %v560 = vshrl.u32 %v238, 16
      %v562 = vrot.slane %v560, 4
      %v563 = vor.u32 %v562, %v558
      %v564 = vrot.slane %v563, 4
      %v566 = vshll.u32 %v239, 16
      %v568 = vrot.slane %v566, 5
      %v569 = vsel %vm257, %v564, %v568
      %v571 = vshrl.u32 %v240, 16
      %v573 = vrot.slane %v571, 4
      %v574 = vshll.u32 %v240, 16
      %v576 = vrot.slane %v574, 5
      %v577 = vor.u32 %v573, %v576
      %v578 = vrot.slane %v577, 4
      %v580 = vshll.u32 %v241, 16
      %v582 = vrot.slane %v580, 5
      %v583 = vsel %vm257, %v578, %v582
      %v584 = vshrl.u32 %v241, 16
      %v586 = vrot.slane %v584, 4
      %v587 = vor.u32 %v586, %v582
      %v588 = vrot.slane %v587, 4
      %v590 = vshll.u32 %v242, 16
      %v592 = vrot.slane %v590, 5
      %v593 = vsel %vm257, %v588, %v592
      %v595 = vshrl.u32 %v243, 16
      %v597 = vrot.slane %v595, 4
      %v598 = vshll.u32 %v243, 16
      %v600 = vrot.slane %v598, 5
      %v601 = vor.u32 %v597, %v600
      %v602 = vrot.slane %v601, 4
      %v604 = vshll.u32 %v244, 16
      %v606 = vrot.slane %v604, 5
      %v607 = vsel %vm257, %v602, %v606
      %v608 = vshrl.u32 %v244, 16
      %v610 = vrot.slane %v608, 4
      %v611 = vor.u32 %v610, %v606
      %v612 = vrot.slane %v611, 4
      %v614 = vshll.u32 %v245, 16
      %v616 = vrot.slane %v614, 5
      %v617 = vsel %vm257, %v612, %v616
      %v619 = vshrl.u32 %v246, 16
      %v621 = vrot.slane %v619, 4
      %v622 = vshll.u32 %v246, 16
      %v624 = vrot.slane %v622, 5
      %v625 = vor.u32 %v621, %v624
      %v626 = vrot.slane %v625, 4
      %v628 = vshll.u32 %v247, 16
      %v630 = vrot.slane %v628, 5
      %v631 = vsel %vm257, %v626, %v630
      %v632 = vshrl.u32 %v247, 16
      %v634 = vrot.slane %v632, 4
      %v635 = vor.u32 %v634, %v630
      %v636 = vrot.slane %v635, 4
      %v638 = vshll.u32 %v248, 16
      %v640 = vrot.slane %v638, 5
      %v641 = vsel %vm257, %v636, %v640
      %v643 = vshrl.u32 %v249, 16
      %v645 = vrot.slane %v643, 4
      %v646 = vshll.u32 %v249, 16
      %v648 = vrot.slane %v646, 5
      %v649 = vor.u32 %v645, %v648
      %v650 = vrot.slane %v649, 4
      %v652 = vshll.u32 %v250, 16
      %v654 = vrot.slane %v652, 5
      %v655 = vsel %vm257, %v650, %v654
      %v656 = vshrl.u32 %v250, 16
      %v658 = vrot.slane %v656, 4
      %v659 = vor.u32 %v658, %v654
      %v660 = vrot.slane %v659, 4
      %v662 = vshll.u32 %v251, 16
      %v664 = vrot.slane %v662, 5
      %v665 = vsel %vm257, %v660, %v664
      %v667 = vshrl.u32 %v252, 16
      %v669 = vrot.slane %v667, 4
      %v670 = vshll.u32 %v252, 16
      %v672 = vrot.slane %v670, 5
      %v673 = vor.u32 %v669, %v672
      %v674 = vrot.slane %v673, 4
      %v676 = vshll.u32 %v253, 16
      %v678 = vrot.slane %v676, 5
      %v679 = vsel %vm257, %v674, %v678
      %v680 = vshrl.u32 %v253, 16
      %v682 = vrot.slane %v680, 4
      %v683 = vor.u32 %v682, %v678
      %v684 = vrot.slane %v683, 4
      %v686 = vshll.u32 %v254, 16
      %v688 = vrot.slane %v686, 5
      %v689 = vsel %vm257, %v684, %v688
      %vm738 = vcmask 1042432
      %vm739 = vcmask 1046532
      %vm740 = vmor %vm738, %vm739
      %v741 = vrot.slane %v201, 5
      %v742 = vrot.slane %v741, 4
      %v743 = vrot.slane %v202, 5
      %v744 = vsel %vm740, %v742, %v743
      %v745 = vrot.slane %v743, 4
      %v746 = vrot.slane %v203, 5
      %v747 = vsel %vm740, %v745, %v746
      %v748 = vrot.slane %v204, 5
      %v749 = vrot.slane %v748, 4
      %v750 = vrot.slane %v205, 5
      %v751 = vsel %vm740, %v749, %v750
      %v752 = vrot.slane %v750, 4
      %v753 = vrot.slane %v206, 5
      %v754 = vsel %vm740, %v752, %v753
      %v755 = vrot.slane %v207, 5
      %v756 = vrot.slane %v755, 4
      %v757 = vrot.slane %v208, 5
      %v758 = vsel %vm740, %v756, %v757
      %v759 = vrot.slane %v757, 4
      %v760 = vrot.slane %v209, 5
      %v761 = vsel %vm740, %v759, %v760
      %v762 = vrot.slane %v210, 5
      %v763 = vrot.slane %v762, 4
      %v764 = vrot.slane %v211, 5
      %v765 = vsel %vm740, %v763, %v764
      %v766 = vrot.slane %v764, 4
      %v767 = vrot.slane %v212, 5
      %v768 = vsel %vm740, %v766, %v767
      %v769 = vrot.slane %v213, 5
      %v770 = vrot.slane %v769, 4
      %v771 = vrot.slane %v214, 5
      %v772 = vsel %vm740, %v770, %v771
      %v773 = vrot.slane %v771, 4
      %v774 = vrot.slane %v215, 5
      %v775 = vsel %vm740, %v773, %v774
      %v776 = vrot.slane %v216, 5
      %v777 = vrot.slane %v776, 4
      %v778 = vrot.slane %v217, 5
      %v779 = vsel %vm740, %v777, %v778
      %v780 = vrot.slane %v778, 4
      %v781 = vrot.slane %v218, 5
      %v782 = vsel %vm740, %v780, %v781
      %v783 = vrot.slane %v219, 5
      %v784 = vrot.slane %v783, 4
      %v785 = vrot.slane %v220, 5
      %v786 = vsel %vm740, %v784, %v785
      %v787 = vrot.slane %v785, 4
      %v788 = vrot.slane %v221, 5
      %v789 = vsel %vm740, %v787, %v788
      %v790 = vrot.slane %v222, 5
      %v791 = vrot.slane %v790, 4
      %v792 = vrot.slane %v223, 5
      %v793 = vsel %vm740, %v791, %v792
      %v794 = vrot.slane %v792, 4
      %v795 = vrot.slane %v224, 5
      %v796 = vsel %vm740, %v794, %v795
      %v797 = vrot.slane %v225, 5
      %v798 = vrot.slane %v797, 4
      %v799 = vrot.slane %v226, 5
      %v800 = vsel %vm740, %v798, %v799
      %v801 = vrot.slane %v799, 4
      %v802 = vrot.slane %v227, 5
      %v803 = vsel %vm740, %v801, %v802
      %v804 = vrot.slane %v228, 5
      %v805 = vrot.slane %v804, 4
      %v806 = vrot.slane %v229, 5
      %v807 = vsel %vm740, %v805, %v806
      %v808 = vrot.slane %v806, 4
      %v809 = vrot.slane %v230, 5
      %v810 = vsel %vm740, %v808, %v809
      %v811 = vrot.slane %v231, 5
      %v812 = vrot.slane %v811, 4
      %v813 = vrot.slane %v232, 5
      %v814 = vsel %vm740, %v812, %v813
      %v815 = vrot.slane %v813, 4
      %v816 = vrot.slane %v233, 5
      %v817 = vsel %vm740, %v815, %v816
      %v818 = vrot.slane %v234, 5
      %v819 = vrot.slane %v818, 4
      %v820 = vrot.slane %v235, 5
      %v821 = vsel %vm740, %v819, %v820
      %v822 = vrot.slane %v820, 4
      %v823 = vrot.slane %v236, 5
      %v824 = vsel %vm740, %v822, %v823
      %v825 = vrot.slane %v237, 5
      %v826 = vrot.slane %v825, 4
      %v827 = vrot.slane %v238, 5
      %v828 = vsel %vm740, %v826, %v827
      %v829 = vrot.slane %v827, 4
      %v830 = vrot.slane %v239, 5
      %v831 = vsel %vm740, %v829, %v830
      %v832 = vrot.slane %v240, 5
      %v833 = vrot.slane %v832, 4
      %v834 = vrot.slane %v241, 5
      %v835 = vsel %vm740, %v833, %v834
      %v836 = vrot.slane %v834, 4
      %v837 = vrot.slane %v242, 5
      %v838 = vsel %vm740, %v836, %v837
      %v839 = vrot.slane %v243, 5
      %v840 = vrot.slane %v839, 4
      %v841 = vrot.slane %v244, 5
      %v842 = vsel %vm740, %v840, %v841
      %v843 = vrot.slane %v841, 4
      %v844 = vrot.slane %v245, 5
      %v845 = vsel %vm740, %v843, %v844
      %v846 = vrot.slane %v246, 5
      %v847 = vrot.slane %v846, 4
      %v848 = vrot.slane %v247, 5
      %v849 = vsel %vm740, %v847, %v848
      %v850 = vrot.slane %v848, 4
      %v851 = vrot.slane %v248, 5
      %v852 = vsel %vm740, %v850, %v851
      %v856 = vrot.slane %v249, 5
      %v857 = vrot.slane %v856, 4
      %v858 = vrot.slane %v250, 5
      %v859 = vsel %vm740, %v857, %v858
      %v860 = vrot.slane %v858, 4
      %v861 = vrot.slane %v251, 5
      %v862 = vsel %vm740, %v860, %v861
      %v866 = vrot.slane %v252, 5
      %v867 = vrot.slane %v866, 4
      %v868 = vrot.slane %v253, 5
      %v869 = vsel %vm740, %v867, %v868
      %v870 = vrot.slane %v868, 4
      %v871 = vrot.slane %v254, 5
      %v872 = vsel %vm740, %v870, %v871
      %v873 = vunpack.c.l.b16 %v201
      %v874 = vunpack.c.l.b16 %v202
      %v875 = vunpack.c.l.b16 %v204
      %v876 = vunpack.c.l.b16 %v205
      %v877 = vunpack.c.l.b16 %v207
      %v878 = vunpack.c.l.b16 %v208
      %v879 = vunpack.c.l.b16 %v210
      %v880 = vunpack.c.l.b16 %v211
      %v881 = vunpack.c.l.b16 %v213
      %v882 = vunpack.c.l.b16 %v214
      %v883 = vunpack.c.l.b16 %v216
      %v884 = vunpack.c.l.b16 %v217
      %v885 = vunpack.c.l.b16 %v219
      %v886 = vunpack.c.l.b16 %v220
      %v887 = vunpack.c.l.b16 %v222
      %v888 = vunpack.c.l.b16 %v223
      %v889 = vunpack.c.l.b16 %v225
      %v890 = vunpack.c.l.b16 %v226
      %v891 = vunpack.c.l.b16 %v228
      %v892 = vunpack.c.l.b16 %v229
      %v893 = vunpack.c.l.b16 %v231
      %v894 = vunpack.c.l.b16 %v232
      %v895 = vunpack.c.l.b16 %v234
      %v896 = vunpack.c.l.b16 %v235
      %v897 = vunpack.c.l.b16 %v237
      %v898 = vunpack.c.l.b16 %v238
      %v899 = vunpack.c.l.b16 %v240
      %v900 = vunpack.c.l.b16 %v241
      %v901 = vunpack.c.l.b16 %v243
      %v902 = vunpack.c.l.b16 %v244
      %v903 = vunpack.c.l.b16 %v246
      %v904 = vunpack.c.l.b16 %v247
      %v905 = vpack.c.b16 %v874, %v873
      %v906 = vpack.c.b16 %v876, %v875
      %v907 = vpack.c.b16 %v878, %v877
      %v908 = vpack.c.b16 %v880, %v879
      %v909 = vpack.c.b16 %v882, %v881
      %v910 = vpack.c.b16 %v884, %v883
      %v911 = vpack.c.b16 %v886, %v885
      %v912 = vpack.c.b16 %v888, %v887
      %v913 = vpack.c.b16 %v890, %v889
      %v914 = vpack.c.b16 %v892, %v891
      %v915 = vpack.c.b16 %v894, %v893
      %v916 = vpack.c.b16 %v896, %v895
      %v917 = vpack.c.b16 %v898, %v897
      %v918 = vpack.c.b16 %v900, %v899
      %v919 = vpack.c.b16 %v902, %v901
      %v920 = vpack.c.b16 %v904, %v903
      %v921 = vunpack.c.l.b16 %v249
      %v922 = vunpack.c.l.b16 %v250
      %v923 = vpack.c.b16 %v922, %v921
      %924 = vrot.lane.b32.xlu0 %v906, 24
      %v925 = vpop.permute.xlu0 %924
      %926 = vrot.lane.b32.xlu0 %v907, 24
      %v927 = vpop.permute.xlu0 %926
      %928 = vrot.lane.b32.xlu0 %v908, 24
      %v929 = vpop.permute.xlu0 %928
      %930 = vrot.lane.b32.xlu0 %v909, 24
      %v931 = vpop.permute.xlu0 %930
      %932 = vrot.lane.b32.xlu0 %v910, 24
      %v933 = vpop.permute.xlu0 %932
      %934 = vrot.lane.b32.xlu0 %v911, 24
      %v935 = vpop.permute.xlu0 %934
      %936 = vrot.lane.b32.xlu0 %v912, 24
      %v937 = vpop.permute.xlu0 %936
      %938 = vrot.lane.b32.xlu0 %v913, 24
      %v939 = vpop.permute.xlu0 %938
      %940 = vrot.lane.b32.xlu0 %v914, 24
      %v941 = vpop.permute.xlu0 %940
      %942 = vrot.lane.b32.xlu0 %v915, 24
      %v943 = vpop.permute.xlu0 %942
      %944 = vrot.lane.b32.xlu0 %v916, 24
      %v945 = vpop.permute.xlu0 %944
      %946 = vrot.lane.b32.xlu0 %v917, 24
      %v947 = vpop.permute.xlu0 %946
      %948 = vrot.lane.b32.xlu0 %v918, 24
      %v949 = vpop.permute.xlu0 %948
      %950 = vrot.lane.b32.xlu0 %v919, 24
      %v951 = vpop.permute.xlu0 %950
      %952 = vrot.lane.b32.xlu0 %v920, 24
      %v953 = vpop.permute.xlu0 %952
      %954 = vrot.lane.b32.xlu0 %v923, 24
      %v955 = vpop.permute.xlu0 %954
      %v956 = vunpack.c.l.b16 %v252
      %v957 = vunpack.c.l.b16 %v253
      %v958 = vpack.c.b16 %v957, %v956
      %959 = vrot.lane.b32.xlu0 %v907, 48
      %v960 = vpop.permute.xlu0 %959
      %961 = vrot.lane.b32.xlu0 %v908, 48
      %v962 = vpop.permute.xlu0 %961
      %963 = vrot.lane.b32.xlu0 %v909, 48
      %v964 = vpop.permute.xlu0 %963
      %965 = vrot.lane.b32.xlu0 %v910, 48
      %v966 = vpop.permute.xlu0 %965
      %967 = vrot.lane.b32.xlu0 %v911, 48
      %v968 = vpop.permute.xlu0 %967
      %969 = vrot.lane.b32.xlu0 %v912, 48
      %v970 = vpop.permute.xlu0 %969
      %971 = vrot.lane.b32.xlu0 %v913, 48
      %v972 = vpop.permute.xlu0 %971
      %973 = vrot.lane.b32.xlu0 %v914, 48
      %v974 = vpop.permute.xlu0 %973
      %975 = vrot.lane.b32.xlu0 %v915, 48
      %v976 = vpop.permute.xlu0 %975
      %977 = vrot.lane.b32.xlu0 %v916, 48
      %v978 = vpop.permute.xlu0 %977
      %979 = vrot.lane.b32.xlu0 %v917, 48
      %v980 = vpop.permute.xlu0 %979
      %981 = vrot.lane.b32.xlu0 %v918, 48
      %v982 = vpop.permute.xlu0 %981
      %983 = vrot.lane.b32.xlu0 %v919, 48
      %v984 = vpop.permute.xlu0 %983
      %985 = vrot.lane.b32.xlu0 %v920, 48
      %v986 = vpop.permute.xlu0 %985
      %987 = vrot.lane.b32.xlu0 %v923, 48
      %v988 = vpop.permute.xlu0 %987
      %989 = vrot.lane.b32.xlu0 %v958, 48
      %v990 = vpop.permute.xlu0 %989
      %v991 = vunpack.c.l.b16 %v271
      %v992 = vunpack.c.l.b16 %v281
      %v993 = vunpack.c.l.b16 %v295
      %v994 = vunpack.c.l.b16 %v305
      %v995 = vunpack.c.l.b16 %v319
      %v996 = vunpack.c.l.b16 %v329
      %v997 = vunpack.c.l.b16 %v343
      %v998 = vunpack.c.l.b16 %v353
      %v999 = vunpack.c.l.b16 %v367
      %v1000 = vunpack.c.l.b16 %v377
      %v1001 = vunpack.c.l.b16 %v391
      %v1002 = vunpack.c.l.b16 %v401
      %v1003 = vunpack.c.l.b16 %v415
      %v1004 = vunpack.c.l.b16 %v425
      %v1005 = vunpack.c.l.b16 %v439
      %v1006 = vunpack.c.l.b16 %v449
      %v1007 = vunpack.c.l.b16 %v463
      %v1008 = vunpack.c.l.b16 %v473
      %v1009 = vunpack.c.l.b16 %v487
      %v1010 = vunpack.c.l.b16 %v497
      %v1011 = vunpack.c.l.b16 %v511
      %v1012 = vunpack.c.l.b16 %v521
      %v1013 = vunpack.c.l.b16 %v535
      %v1014 = vunpack.c.l.b16 %v545
      %v1015 = vunpack.c.l.b16 %v559
      %v1016 = vunpack.c.l.b16 %v569
      %v1017 = vunpack.c.l.b16 %v583
      %v1018 = vunpack.c.l.b16 %v593
      %v1019 = vunpack.c.l.b16 %v607
      %v1020 = vunpack.c.l.b16 %v617
      %v1021 = vunpack.c.l.b16 %v631
      %v1022 = vunpack.c.l.b16 %v641
      %v1023 = vpack.c.b16 %v992, %v991
      %v1024 = vpack.c.b16 %v994, %v993
      %v1025 = vpack.c.b16 %v996, %v995
      %v1026 = vpack.c.b16 %v998, %v997
      %v1027 = vpack.c.b16 %v1000, %v999
      %v1028 = vpack.c.b16 %v1002, %v1001
      %v1029 = vpack.c.b16 %v1004, %v1003
      %v1030 = vpack.c.b16 %v1006, %v1005
      %v1031 = vpack.c.b16 %v1008, %v1007
      %v1032 = vpack.c.b16 %v1010, %v1009
      %v1033 = vpack.c.b16 %v1012, %v1011
      %v1034 = vpack.c.b16 %v1014, %v1013
      %v1035 = vpack.c.b16 %v1016, %v1015
      %v1036 = vpack.c.b16 %v1018, %v1017
      %v1037 = vpack.c.b16 %v1020, %v1019
      %v1038 = vpack.c.b16 %v1022, %v1021
      %1039 = vrot.lane.b32.xlu0 %v1023, 72
      %v1040 = vpop.permute.xlu0 %1039
      %1041 = vrot.lane.b32.xlu0 %v1024, 72
      %v1042 = vpop.permute.xlu0 %1041
      %1043 = vrot.lane.b32.xlu0 %v1025, 72
      %v1044 = vpop.permute.xlu0 %1043
      %1045 = vrot.lane.b32.xlu0 %v1026, 72
      %v1046 = vpop.permute.xlu0 %1045
      %1047 = vrot.lane.b32.xlu0 %v1027, 72
      %v1048 = vpop.permute.xlu0 %1047
      %1049 = vrot.lane.b32.xlu0 %v1028, 72
      %v1050 = vpop.permute.xlu0 %1049
      %1051 = vrot.lane.b32.xlu0 %v1029, 72
      %v1052 = vpop.permute.xlu0 %1051
      %1053 = vrot.lane.b32.xlu0 %v1030, 72
      %v1054 = vpop.permute.xlu0 %1053
      %1055 = vrot.lane.b32.xlu0 %v1031, 72
      %v1056 = vpop.permute.xlu0 %1055
      %1057 = vrot.lane.b32.xlu0 %v1032, 72
      %v1058 = vpop.permute.xlu0 %1057
      %1059 = vrot.lane.b32.xlu0 %v1033, 72
      %v1060 = vpop.permute.xlu0 %1059
      %1061 = vrot.lane.b32.xlu0 %v1034, 72
      %v1062 = vpop.permute.xlu0 %1061
      %1063 = vrot.lane.b32.xlu0 %v1035, 72
      %v1064 = vpop.permute.xlu0 %1063
      %1065 = vrot.lane.b32.xlu0 %v1036, 72
      %v1066 = vpop.permute.xlu0 %1065
      %1067 = vrot.lane.b32.xlu0 %v1037, 72
      %v1068 = vpop.permute.xlu0 %1067
      %1069 = vrot.lane.b32.xlu0 %v1038, 72
      %v1070 = vpop.permute.xlu0 %1069
      %v1071 = vunpack.c.l.b16 %v655
      %v1072 = vunpack.c.l.b16 %v665
      %v1073 = vpack.c.b16 %v1072, %v1071
      %1074 = vrot.lane.b32.xlu0 %v1024, 96
      %v1075 = vpop.permute.xlu0 %1074
      %1076 = vrot.lane.b32.xlu0 %v1025, 96
      %v1077 = vpop.permute.xlu0 %1076
      %1078 = vrot.lane.b32.xlu0 %v1026, 96
      %v1079 = vpop.permute.xlu0 %1078
      %1080 = vrot.lane.b32.xlu0 %v1027, 96
      %v1081 = vpop.permute.xlu0 %1080
      %1082 = vrot.lane.b32.xlu0 %v1028, 96
      %v1083 = vpop.permute.xlu0 %1082
      %1084 = vrot.lane.b32.xlu0 %v1029, 96
      %v1085 = vpop.permute.xlu0 %1084
      %1086 = vrot.lane.b32.xlu0 %v1030, 96
      %v1087 = vpop.permute.xlu0 %1086
      %1088 = vrot.lane.b32.xlu0 %v1031, 96
      %v1089 = vpop.permute.xlu0 %1088
      %1090 = vrot.lane.b32.xlu0 %v1032, 96
      %v1091 = vpop.permute.xlu0 %1090
      %1092 = vrot.lane.b32.xlu0 %v1033, 96
      %v1093 = vpop.permute.xlu0 %1092
      %1094 = vrot.lane.b32.xlu0 %v1034, 96
      %v1095 = vpop.permute.xlu0 %1094
      %1096 = vrot.lane.b32.xlu0 %v1035, 96
      %v1097 = vpop.permute.xlu0 %1096
      %1098 = vrot.lane.b32.xlu0 %v1036, 96
      %v1099 = vpop.permute.xlu0 %1098
      %1100 = vrot.lane.b32.xlu0 %v1037, 96
      %v1101 = vpop.permute.xlu0 %1100
      %1102 = vrot.lane.b32.xlu0 %v1038, 96
      %v1103 = vpop.permute.xlu0 %1102
      %1104 = vrot.lane.b32.xlu0 %v1073, 96
      %v1105 = vpop.permute.xlu0 %1104
      %v1106 = vunpack.c.l.b16 %v679
      %v1107 = vunpack.c.l.b16 %v689
      %v1108 = vpack.c.b16 %v1107, %v1106
      %1109 = vrot.lane.b32.xlu0 %v1025, 120
      %v1110 = vpop.permute.xlu0 %1109
      %1111 = vrot.lane.b32.xlu0 %v1026, 120
      %v1112 = vpop.permute.xlu0 %1111
      %1113 = vrot.lane.b32.xlu0 %v1027, 120
      %v1114 = vpop.permute.xlu0 %1113
      %1115 = vrot.lane.b32.xlu0 %v1028, 120
      %v1116 = vpop.permute.xlu0 %1115
      %1117 = vrot.lane.b32.xlu0 %v1029, 120
      %v1118 = vpop.permute.xlu0 %1117
      %1119 = vrot.lane.b32.xlu0 %v1030, 120
      %v1120 = vpop.permute.xlu0 %1119
      %1121 = vrot.lane.b32.xlu0 %v1031, 120
      %v1122 = vpop.permute.xlu0 %1121
      %1123 = vrot.lane.b32.xlu0 %v1032, 120
      %v1124 = vpop.permute.xlu0 %1123
      %1125 = vrot.lane.b32.xlu0 %v1033, 120
      %v1126 = vpop.permute.xlu0 %1125
      %1127 = vrot.lane.b32.xlu0 %v1034, 120
      %v1128 = vpop.permute.xlu0 %1127
      %1129 = vrot.lane.b32.xlu0 %v1035, 120
      %v1130 = vpop.permute.xlu0 %1129
      %1131 = vrot.lane.b32.xlu0 %v1036, 120
      %v1132 = vpop.permute.xlu0 %1131
      %1133 = vrot.lane.b32.xlu0 %v1037, 120
      %v1134 = vpop.permute.xlu0 %1133
      %1135 = vrot.lane.b32.xlu0 %v1038, 120
      %v1136 = vpop.permute.xlu0 %1135
      %1137 = vrot.lane.b32.xlu0 %v1073, 120
      %v1138 = vpop.permute.xlu0 %1137
      %1139 = vrot.lane.b32.xlu0 %v1108, 120
      %v1140 = vpop.permute.xlu0 %1139
      %v1141 = vunpack.c.l.b16 %v744
      %v1142 = vunpack.c.l.b16 %v747
      %v1143 = vunpack.c.l.b16 %v751
      %v1144 = vunpack.c.l.b16 %v754
      %v1145 = vunpack.c.l.b16 %v758
      %v1146 = vunpack.c.l.b16 %v761
      %v1147 = vunpack.c.l.b16 %v765
      %v1148 = vunpack.c.l.b16 %v768
      %v1149 = vunpack.c.l.b16 %v772
      %v1150 = vunpack.c.l.b16 %v775
      %v1151 = vunpack.c.l.b16 %v779
      %v1152 = vunpack.c.l.b16 %v782
      %v1153 = vunpack.c.l.b16 %v786
      %v1154 = vunpack.c.l.b16 %v789
      %v1155 = vunpack.c.l.b16 %v793
      %v1156 = vunpack.c.l.b16 %v796
      %v1157 = vunpack.c.l.b16 %v800
      %v1158 = vunpack.c.l.b16 %v803
      %v1159 = vunpack.c.l.b16 %v807
      %v1160 = vunpack.c.l.b16 %v810
      %v1161 = vunpack.c.l.b16 %v814
      %v1162 = vunpack.c.l.b16 %v817
      %v1163 = vunpack.c.l.b16 %v821
      %v1164 = vunpack.c.l.b16 %v824
      %v1165 = vunpack.c.l.b16 %v828
      %v1166 = vunpack.c.l.b16 %v831
      %v1167 = vunpack.c.l.b16 %v835
      %v1168 = vunpack.c.l.b16 %v838
      %v1169 = vunpack.c.l.b16 %v842
      %v1170 = vunpack.c.l.b16 %v845
      %v1171 = vunpack.c.l.b16 %v849
      %v1172 = vunpack.c.l.b16 %v852
      %v1173 = vpack.c.b16 %v1142, %v1141
      %v1174 = vpack.c.b16 %v1144, %v1143
      %v1175 = vpack.c.b16 %v1146, %v1145
      %v1176 = vpack.c.b16 %v1148, %v1147
      %v1177 = vpack.c.b16 %v1150, %v1149
      %v1178 = vpack.c.b16 %v1152, %v1151
      %v1179 = vpack.c.b16 %v1154, %v1153
      %v1180 = vpack.c.b16 %v1156, %v1155
      %v1181 = vpack.c.b16 %v1158, %v1157
      %v1182 = vpack.c.b16 %v1160, %v1159
      %v1183 = vpack.c.b16 %v1162, %v1161
      %v1184 = vpack.c.b16 %v1164, %v1163
      %v1185 = vpack.c.b16 %v1166, %v1165
      %v1186 = vpack.c.b16 %v1168, %v1167
      %v1187 = vpack.c.b16 %v1170, %v1169
      %v1188 = vpack.c.b16 %v1172, %v1171
      %1189 = vrot.lane.b32.xlu0 %v1173, 16
      %v1190 = vpop.permute.xlu0 %1189
      %1191 = vrot.lane.b32.xlu0 %v1174, 16
      %v1192 = vpop.permute.xlu0 %1191
      %1193 = vrot.lane.b32.xlu0 %v1175, 16
      %v1194 = vpop.permute.xlu0 %1193
      %1195 = vrot.lane.b32.xlu0 %v1176, 16
      %v1196 = vpop.permute.xlu0 %1195
      %1197 = vrot.lane.b32.xlu0 %v1177, 16
      %v1198 = vpop.permute.xlu0 %1197
      %1199 = vrot.lane.b32.xlu0 %v1178, 16
      %v1200 = vpop.permute.xlu0 %1199
      %1201 = vrot.lane.b32.xlu0 %v1179, 16
      %v1202 = vpop.permute.xlu0 %1201
      %1203 = vrot.lane.b32.xlu0 %v1180, 16
      %v1204 = vpop.permute.xlu0 %1203
      %1205 = vrot.lane.b32.xlu0 %v1181, 16
      %v1206 = vpop.permute.xlu0 %1205
      %1207 = vrot.lane.b32.xlu0 %v1182, 16
      %v1208 = vpop.permute.xlu0 %1207
      %1209 = vrot.lane.b32.xlu0 %v1183, 16
      %v1210 = vpop.permute.xlu0 %1209
      %1211 = vrot.lane.b32.xlu0 %v1184, 16
      %v1212 = vpop.permute.xlu0 %1211
      %1213 = vrot.lane.b32.xlu0 %v1185, 16
      %v1214 = vpop.permute.xlu0 %1213
      %1215 = vrot.lane.b32.xlu0 %v1186, 16
      %v1216 = vpop.permute.xlu0 %1215
      %1217 = vrot.lane.b32.xlu0 %v1187, 16
      %v1218 = vpop.permute.xlu0 %1217
      %1219 = vrot.lane.b32.xlu0 %v1188, 16
      %v1220 = vpop.permute.xlu0 %1219
      %v1221 = vunpack.c.l.b16 %v859
      %v1222 = vunpack.c.l.b16 %v862
      %v1223 = vpack.c.b16 %v1222, %v1221
      %1224 = vrot.lane.b32.xlu0 %v1174, 40
      %v1225 = vpop.permute.xlu0 %1224
      %1226 = vrot.lane.b32.xlu0 %v1175, 40
      %v1227 = vpop.permute.xlu0 %1226
      %1228 = vrot.lane.b32.xlu0 %v1176, 40
      %v1229 = vpop.permute.xlu0 %1228
      %1230 = vrot.lane.b32.xlu0 %v1177, 40
      %v1231 = vpop.permute.xlu0 %1230
      %1232 = vrot.lane.b32.xlu0 %v1178, 40
      %v1233 = vpop.permute.xlu0 %1232
      %1234 = vrot.lane.b32.xlu0 %v1179, 40
      %v1235 = vpop.permute.xlu0 %1234
      %1236 = vrot.lane.b32.xlu0 %v1180, 40
      %v1237 = vpop.permute.xlu0 %1236
      %1238 = vrot.lane.b32.xlu0 %v1181, 40
      %v1239 = vpop.permute.xlu0 %1238
      %1240 = vrot.lane.b32.xlu0 %v1182, 40
      %v1241 = vpop.permute.xlu0 %1240
      %1242 = vrot.lane.b32.xlu0 %v1183, 40
      %v1243 = vpop.permute.xlu0 %1242
      %1244 = vrot.lane.b32.xlu0 %v1184, 40
      %v1245 = vpop.permute.xlu0 %1244
      %1246 = vrot.lane.b32.xlu0 %v1185, 40
      %v1247 = vpop.permute.xlu0 %1246
      %1248 = vrot.lane.b32.xlu0 %v1186, 40
      %v1249 = vpop.permute.xlu0 %1248
      %1250 = vrot.lane.b32.xlu0 %v1187, 40
      %v1251 = vpop.permute.xlu0 %1250
      %1252 = vrot.lane.b32.xlu0 %v1188, 40
      %v1253 = vpop.permute.xlu0 %1252
      %1254 = vrot.lane.b32.xlu0 %v1223, 40
      %v1255 = vpop.permute.xlu0 %1254
      %v1256 = vunpack.c.l.b16 %v869
      %v1257 = vunpack.c.l.b16 %v872
      %v1258 = vpack.c.b16 %v1257, %v1256
      %1259 = vrot.lane.b32.xlu0 %v1175, 64
      %v1260 = vpop.permute.xlu0 %1259
      %1261 = vrot.lane.b32.xlu0 %v1176, 64
      %v1262 = vpop.permute.xlu0 %1261
      %1263 = vrot.lane.b32.xlu0 %v1177, 64
      %v1264 = vpop.permute.xlu0 %1263
      %1265 = vrot.lane.b32.xlu0 %v1178, 64
      %v1266 = vpop.permute.xlu0 %1265
      %1267 = vrot.lane.b32.xlu0 %v1179, 64
      %v1268 = vpop.permute.xlu0 %1267
      %1269 = vrot.lane.b32.xlu0 %v1180, 64
      %v1270 = vpop.permute.xlu0 %1269
      %1271 = vrot.lane.b32.xlu0 %v1181, 64
      %v1272 = vpop.permute.xlu0 %1271
      %1273 = vrot.lane.b32.xlu0 %v1182, 64
      %v1274 = vpop.permute.xlu0 %1273
      %1275 = vrot.lane.b32.xlu0 %v1183, 64
      %v1276 = vpop.permute.xlu0 %1275
      %1277 = vrot.lane.b32.xlu0 %v1184, 64
      %v1278 = vpop.permute.xlu0 %1277
      %1279 = vrot.lane.b32.xlu0 %v1185, 64
      %v1280 = vpop.permute.xlu0 %1279
      %1281 = vrot.lane.b32.xlu0 %v1186, 64
      %v1282 = vpop.permute.xlu0 %1281
      %1283 = vrot.lane.b32.xlu0 %v1187, 64
      %v1284 = vpop.permute.xlu0 %1283
      %1285 = vrot.lane.b32.xlu0 %v1188, 64
      %v1286 = vpop.permute.xlu0 %1285
      %1287 = vrot.lane.b32.xlu0 %v1223, 64
      %v1288 = vpop.permute.xlu0 %1287
      %1289 = vrot.lane.b32.xlu0 %v1258, 64
      %v1290 = vpop.permute.xlu0 %1289
      %vm1291 = vcmask 195584
      %v1294 = vsel %vm1291, %v905, %v925
      %v1297 = vsel %vm1291, %v906, %v927
      %v1300 = vsel %vm1291, %v907, %v929
      %v1303 = vsel %vm1291, %v908, %v931
      %v1306 = vsel %vm1291, %v909, %v933
      %v1309 = vsel %vm1291, %v910, %v935
      %v1312 = vsel %vm1291, %v911, %v937
      %v1315 = vsel %vm1291, %v912, %v939
      %v1318 = vsel %vm1291, %v913, %v941
      %v1321 = vsel %vm1291, %v914, %v943
      %v1324 = vsel %vm1291, %v915, %v945
      %v1327 = vsel %vm1291, %v916, %v947
      %v1330 = vsel %vm1291, %v917, %v949
      %v1333 = vsel %vm1291, %v918, %v951
      %v1336 = vsel %vm1291, %v919, %v953
      %v1339 = vsel %vm1291, %v920, %v955
      %vm1340 = vcmask 392192
      %v1342 = vsel %vm1340, %v1294, %v960
      %v1344 = vsel %vm1340, %v1297, %v962
      %v1346 = vsel %vm1340, %v1300, %v964
      %v1348 = vsel %vm1340, %v1303, %v966
      %v1350 = vsel %vm1340, %v1306, %v968
      %v1352 = vsel %vm1340, %v1309, %v970
      %v1354 = vsel %vm1340, %v1312, %v972
      %v1356 = vsel %vm1340, %v1315, %v974
      %v1358 = vsel %vm1340, %v1318, %v976
      %v1360 = vsel %vm1340, %v1321, %v978
      %v1362 = vsel %vm1340, %v1324, %v980
      %v1364 = vsel %vm1340, %v1327, %v982
      %v1366 = vsel %vm1340, %v1330, %v984
      %v1368 = vsel %vm1340, %v1333, %v986
      %v1370 = vsel %vm1340, %v1336, %v988
      %v1372 = vsel %vm1340, %v1339, %v990
      %vm1373 = vcmask 588800
      %v1375 = vsel %vm1373, %v1342, %v1040
      %v1377 = vsel %vm1373, %v1344, %v1042
      %v1379 = vsel %vm1373, %v1346, %v1044
      %v1381 = vsel %vm1373, %v1348, %v1046
      %v1383 = vsel %vm1373, %v1350, %v1048
      %v1385 = vsel %vm1373, %v1352, %v1050
      %v1387 = vsel %vm1373, %v1354, %v1052
      %v1389 = vsel %vm1373, %v1356, %v1054
      %v1391 = vsel %vm1373, %v1358, %v1056
      %v1393 = vsel %vm1373, %v1360, %v1058
      %v1395 = vsel %vm1373, %v1362, %v1060
      %v1397 = vsel %vm1373, %v1364, %v1062
      %v1399 = vsel %vm1373, %v1366, %v1064
      %v1401 = vsel %vm1373, %v1368, %v1066
      %v1403 = vsel %vm1373, %v1370, %v1068
      %v1405 = vsel %vm1373, %v1372, %v1070
      %vm1406 = vcmask 785408
      %v1408 = vsel %vm1406, %v1375, %v1075
      %v1410 = vsel %vm1406, %v1377, %v1077
      %v1412 = vsel %vm1406, %v1379, %v1079
      %v1414 = vsel %vm1406, %v1381, %v1081
      %v1416 = vsel %vm1406, %v1383, %v1083
      %v1418 = vsel %vm1406, %v1385, %v1085
      %v1420 = vsel %vm1406, %v1387, %v1087
      %v1422 = vsel %vm1406, %v1389, %v1089
      %v1424 = vsel %vm1406, %v1391, %v1091
      %v1426 = vsel %vm1406, %v1393, %v1093
      %v1428 = vsel %vm1406, %v1395, %v1095
      %v1430 = vsel %vm1406, %v1397, %v1097
      %v1432 = vsel %vm1406, %v1399, %v1099
      %v1434 = vsel %vm1406, %v1401, %v1101
      %v1436 = vsel %vm1406, %v1403, %v1103
      %v1438 = vsel %vm1406, %v1405, %v1105
      %vm1439 = vcmask 982016
      %v1441 = vsel %vm1439, %v1408, %v1110
      %v1444 = vsel %vm1439, %v1410, %v1112
      %v1447 = vsel %vm1439, %v1412, %v1114
      %v1450 = vsel %vm1439, %v1414, %v1116
      %v1453 = vsel %vm1439, %v1416, %v1118
      %v1456 = vsel %vm1439, %v1418, %v1120
      %v1459 = vsel %vm1439, %v1420, %v1122
      %v1462 = vsel %vm1439, %v1422, %v1124
      %v1465 = vsel %vm1439, %v1424, %v1126
      %v1468 = vsel %vm1439, %v1426, %v1128
      %v1471 = vsel %vm1439, %v1428, %v1130
      %v1474 = vsel %vm1439, %v1430, %v1132
      %v1477 = vsel %vm1439, %v1432, %v1134
      %v1480 = vsel %vm1439, %v1434, %v1136
      %v1483 = vsel %vm1439, %v1436, %v1138
      %v1486 = vsel %vm1439, %v1438, %v1140
      %vm1488 = vcmask 130048
      %v1490 = vsel %vm1488, %v1110, %v1190
      %v1492 = vsel %vm1488, %v1112, %v1192
      %v1494 = vsel %vm1488, %v1114, %v1194
      %v1496 = vsel %vm1488, %v1116, %v1196
      %v1498 = vsel %vm1488, %v1118, %v1198
      %v1500 = vsel %vm1488, %v1120, %v1200
      %v1502 = vsel %vm1488, %v1122, %v1202
      %v1504 = vsel %vm1488, %v1124, %v1204
      %v1506 = vsel %vm1488, %v1126, %v1206
      %v1508 = vsel %vm1488, %v1128, %v1208
      %v1510 = vsel %vm1488, %v1130, %v1210
      %v1512 = vsel %vm1488, %v1132, %v1212
      %v1514 = vsel %vm1488, %v1134, %v1214
      %v1516 = vsel %vm1488, %v1136, %v1216
      %v1518 = vsel %vm1488, %v1138, %v1218
      %v1520 = vsel %vm1488, %v1140, %v1220
      %vm1521 = vcmask 326656
      %v1523 = vsel %vm1521, %v1490, %v1225
      %v1525 = vsel %vm1521, %v1492, %v1227
      %v1527 = vsel %vm1521, %v1494, %v1229
      %v1529 = vsel %vm1521, %v1496, %v1231
      %v1531 = vsel %vm1521, %v1498, %v1233
      %v1533 = vsel %vm1521, %v1500, %v1235
      %v1535 = vsel %vm1521, %v1502, %v1237
      %v1537 = vsel %vm1521, %v1504, %v1239
      %v1539 = vsel %vm1521, %v1506, %v1241
      %v1541 = vsel %vm1521, %v1508, %v1243
      %v1543 = vsel %vm1521, %v1510, %v1245
      %v1545 = vsel %vm1521, %v1512, %v1247
      %v1547 = vsel %vm1521, %v1514, %v1249
      %v1549 = vsel %vm1521, %v1516, %v1251
      %v1551 = vsel %vm1521, %v1518, %v1253
      %v1553 = vsel %vm1521, %v1520, %v1255
      %vm1554 = vcmask 523264
      %v1556 = vsel %vm1554, %v1523, %v1260
      %v1558 = vsel %vm1554, %v1525, %v1262
      %v1560 = vsel %vm1554, %v1527, %v1264
      %v1562 = vsel %vm1554, %v1529, %v1266
      %v1564 = vsel %vm1554, %v1531, %v1268
      %v1566 = vsel %vm1554, %v1533, %v1270
      %v1568 = vsel %vm1554, %v1535, %v1272
      %v1570 = vsel %vm1554, %v1537, %v1274
      %v1572 = vsel %vm1554, %v1539, %v1276
      %v1574 = vsel %vm1554, %v1541, %v1278
      %v1576 = vsel %vm1554, %v1543, %v1280
      %v1578 = vsel %vm1554, %v1545, %v1282
      %v1580 = vsel %vm1554, %v1547, %v1284
      %v1582 = vsel %vm1554, %v1549, %v1286
      %v1584 = vsel %vm1554, %v1551, %v1288
      %v1586 = vsel %vm1554, %v1553, %v1290
      %v1587 = vld [vmem:[%s1] sm:$0xf]
      %v1588 = vld [vmem:[%s2] sm:$0x7]
      %1590 = vset.pattern.permute.xlu0 0
      %1591 = vperm.xlu0 %1590, %v1588
      %v1592 = vpop.permute.xlu0 %1591
      %1595 = vst [vmem:[#allocation1] ss:$4 sm:$0xff] %v1587
      %v1596 = vld.sshfl [vmem:[#allocation1] sm:$0xff pattern:$0x73625140]
      %v1597 = vld.sshfl [vmem:[#allocation1 + $0x8] sm:$0xff pattern:$0x73625140]
      %vm1599 = vcmask 719872
      %v1600 = vsel %vm1599, %v1597, 0
      %v1602 = vsel %vm1599, %v1556, 0
      %v1604 = vsel %vm1599, %v1558, 0
      %v1606 = vsel %vm1599, %v1560, 0
      %v1608 = vsel %vm1599, %v1562, 0
      %v1610 = vsel %vm1599, %v1564, 0
      %v1612 = vsel %vm1599, %v1566, 0
      %v1614 = vsel %vm1599, %v1568, 0
      %v1616 = vsel %vm1599, %v1570, 0
      %v1618 = vsel %vm1599, %v1572, 0
      %v1620 = vsel %vm1599, %v1574, 0
      %v1622 = vsel %vm1599, %v1576, 0
      %v1624 = vsel %vm1599, %v1578, 0
      %v1626 = vsel %vm1599, %v1580, 0
      %v1628 = vsel %vm1599, %v1582, 0
      %v1630 = vsel %vm1599, %v1584, 0
      %v1632 = vsel %vm1599, %v1586, 0
      %1634 = vmatpush.bf16.xpose.msra.mxu0 %v1462
      %1635 = vmatpush.bf16.xpose.msra.mxu0 %v1459
      %1636 = vmatpush.bf16.xpose.msra.mxu0 %v1456
      %1637 = vmatpush.bf16.xpose.msra.mxu0 %v1453
      %1638 = vmatpush.bf16.xpose.msra.mxu0 %v1450
      %1639 = vmatpush.bf16.xpose.msra.mxu0 %v1447
      %1640 = vmatpush.bf16.xpose.msra.mxu0 %v1444
      %1641 = vmatpush.bf16.xpose.msra.mxu0 %v1441
      %1642 = vmatmul.bf16.gmra.mxu0 %v1596
      %v1643 = vpop.f32.mrf.mxu0
      %v1644 = vadd.f32 %v1592, %v1643
      %v1645 = vpop.f32.mrf.mxu0
      %1646 = vdwg.mxu0
      %1647 = vmatpush.bf16.xpose.msra.mxu0 %v1616
      %1648 = vmatpush.bf16.xpose.msra.mxu0 %v1614
      %1649 = vmatpush.bf16.xpose.msra.mxu0 %v1612
      %1650 = vmatpush.bf16.xpose.msra.mxu0 %v1610
      %1651 = vmatpush.bf16.xpose.msra.mxu0 %v1608
      %1652 = vmatpush.bf16.xpose.msra.mxu0 %v1606
      %1653 = vmatpush.bf16.xpose.msra.mxu0 %v1604
      %1654 = vmatpush.bf16.xpose.msra.mxu0 %v1602
      %1655 = vmatmul.bf16.gmra.mxu0 %v1600
      %v1656 = vpop.f32.mrf.mxu0
      %v1657 = vadd.f32 %v1644, %v1656
      %v1658 = vpop.f32.mrf.mxu0
      %1659 = vdwg.mxu0
      %1660 = vmatpush.bf16.xpose.msra.mxu0 %v1486
      %1661 = vmatpush.bf16.xpose.msra.mxu0 %v1483
      %1662 = vmatpush.bf16.xpose.msra.mxu0 %v1480
      %1663 = vmatpush.bf16.xpose.msra.mxu0 %v1477
      %1664 = vmatpush.bf16.xpose.msra.mxu0 %v1474
      %1665 = vmatpush.bf16.xpose.msra.mxu0 %v1471
      %1666 = vmatpush.bf16.xpose.msra.mxu0 %v1468
      %1667 = vmatpush.bf16.xpose.msra.mxu0 %v1465
      %1668 = vmatmul.bf16.gmra.mxu0 %v1596
      %v1669 = vpop.f32.mrf.mxu0
      %v1670 = vadd.f32 %v1592, %v1669
      %v1671 = vpop.f32.mrf.mxu0
      %1672 = vdwg.mxu0
      %1673 = vmatpush.bf16.xpose.msra.mxu0 %v1632
      %1674 = vmatpush.bf16.xpose.msra.mxu0 %v1630
      %1675 = vmatpush.bf16.xpose.msra.mxu0 %v1628
      %1676 = vmatpush.bf16.xpose.msra.mxu0 %v1626
      %1677 = vmatpush.bf16.xpose.msra.mxu0 %v1624
      %1678 = vmatpush.bf16.xpose.msra.mxu0 %v1622
      %1679 = vmatpush.bf16.xpose.msra.mxu0 %v1620
      %1680 = vmatpush.bf16.xpose.msra.mxu0 %v1618
      %1681 = vmatmul.bf16.gmra.mxu0 %v1600
      %v1682 = vpop.f32.mrf.mxu0
      %v1683 = vadd.f32 %v1670, %v1682
      %v1684 = vpop.f32.mrf.mxu0
      %1685 = vdwg.mxu0
      %v1688 = vrot.slane %v1683, 4
      %vm1689 = vcmask 1043456
      %v1690 = vsel %vm1689, %v1657, %v1688
      %1692 = vst [vmem:[%s199] sm:$0x77] %v1690
      %s1693 = smul.u32 2, %s19
      %p1694 = scmp.lt.s32.totalorder %s18, 1
      %s1695 = scalar_select %p1694, %s18, 1
      %p1696 = scmp.lt.s32.totalorder %s1693, 1
      %s1697 = scalar_select %p1696, %s1693, 1
      %s1698 = smul.addr %s1695, 2
      %s1699 = sadd.s32 %s1697, %s1698
      %s1700 = smul.addr %s1699, 4
      %s1701 = scalar_lea.vmem %s3, %s1700
      // Predicated region
      $region33: #{tpu_custom_call.1} parent=31 // pred_check
        %p1702 = pneg %p116
      $region34: #{tpu_custom_call.1} parent=31 // pred_check_branch
        %1704 = sbr.rel (%p1702) target = $region36
      $region35: #{tpu_custom_call.1} parent=31 // pred_region
        %s1705 = smul.u32 2, %s19
      $region36: #{tpu_custom_call.1} parent=31 // pred_fallthru
        _
    $region32: #{tpu_custom_call.1} parent=5 // pred_fallthru
      _
    %p1706 = scmp.le.s32.totalorder 2, %s9
    // Predicated region
    $region37: #{tpu_custom_call.1} parent=5 // pred_check
      %p1707 = pneg %p1706
    $region38: #{tpu_custom_call.1} parent=5 // pred_check_branch
      %1709 = sbr.rel (%p1707) target = $region40
    $region39: #{tpu_custom_call.1} parent=5 // pred_region
      %s1710 = ssub.s32 %s9, 2
      // Predicated region
      $region41: #{tpu_custom_call.1} parent=39 // pred_check
        %p1711 = pneg %p122
      $region42: #{tpu_custom_call.1} parent=39 // pred_check_branch
        %1713 = sbr.rel (%p1711) target = $region44
      $region43: #{tpu_custom_call.1} parent=39 // pred_region
        %s1714 = smul.u32 2, %s21
        %p1715 = scmp.lt.s32.totalorder %s20, 1
        %s1716 = scalar_select %p1715, %s20, 1
        %p1717 = scmp.lt.s32.totalorder %s1714, 1
        %s1718 = scalar_select %p1717, %s1714, 1
        %s1719 = smul.addr %s1716, 2
        %s1720 = sadd.s32 %s1718, %s1719
        %s1721 = smul.addr %s1720, 4
        %s1722 = scalar_lea.vmem %s3, %s1721
      $region44: #{tpu_custom_call.1} parent=39 // pred_fallthru
        _
    $region40: #{tpu_custom_call.1} parent=5 // pred_fallthru
      _
  $region6: #{tpu_custom_call.1} parent=0 // loop_footer
    %s13 = sadd.s32 1, %s9
  $region7: #{tpu_custom_call.1} parent=0 // loop_footer_branch
    %8 = sbr.rel target = $region3
  $region8: #{tpu_custom_call.1} parent=0 // loop_exit
    _

</llo_original>
